<compile_context>
chip_gen: v7x
topology: tpu7x:2x2x1
jax: 0.10.0
libtpu: 0.0.40
codegen_flags: <defaults>
</compile_context>

<pallas_src>
import functools

import jax
import jax.numpy as jnp
from jax.experimental import pallas as pl
from jax.experimental.pallas import tpu as pltpu


# 3x3 Gaussian kernel (binomial approx): [1,2,1] outer [1,2,1] / 16.
_GAUSS_3x3 = (
    (1.0 / 16.0, 2.0 / 16.0, 1.0 / 16.0),
    (2.0 / 16.0, 4.0 / 16.0, 2.0 / 16.0),
    (1.0 / 16.0, 2.0 / 16.0, 1.0 / 16.0),
)


def _blur3x3_kernel(x_ref, mtop_ref, mbot_ref, ml_ref, mr_ref, o_ref, *, W):
    """One grid step = TB whole (H, W) planes, flattened to (TB, L = H*W).

    x_ref    : (TB, L) input planes, L = H*W row-major (lane axis = L)
    mtop_ref : (1, L)  f32 mask: 0 on image row 0, else 1
    mbot_ref : (1, L)  f32 mask: 0 on image row H-1, else 1
    ml_ref   : (1, L)  f32 mask: 0 on image column 0, else 1
    mr_ref   : (1, L)  f32 mask: 0 on image column W-1, else 1
    o_ref    : (TB, L) output planes
    """
    L = x_ref.shape[-1]
    H = L // W
    f32 = jnp.float32

    x = x_ref[...].astype(f32)                      # one load, one cast, reused

    # ---- vertical [1, 2, 1] -------------------------------------------------
    # pltpu.roll(x, s, axis=1)[..., i] == x[..., (i - s) mod L]; the wrap across
    # the first/last image row lands exactly where the zero padding applies, so
    # the row-border masks zero those taps.
    v = x + x                                       # centre (weight 2)
    if H > 1:
        v = v + pltpu.roll(x, W, axis=1) * mtop_ref[...]        # pixel one row up
        v = v + pltpu.roll(x, L - W, axis=1) * mbot_ref[...]    # pixel one row down

    # ---- horizontal [1, 2, 1] -----------------------------------------------
    # The +-1 shift along the flattened axis wraps across image rows at the
    # left/right border; the column-border masks zero exactly those taps.
    h = v + v                                       # centre (weight 2)
    if W > 1:
        h = h + pltpu.roll(v, 1, axis=1) * ml_ref[...]          # left neighbour
        h = h + pltpu.roll(v, L - 1, axis=1) * mr_ref[...]      # right neighbour

    out = h * (1.0 / 16.0)
    if jnp.issubdtype(o_ref.dtype, jnp.integer):
        # Weights sum to <= 1 with zero padding, so no clipping is required;
        # round (not truncate) before the cast.
        out = jnp.round(out)
    o_ref[...] = out.astype(o_ref.dtype)            # single fused store


def _vmem_capacity_bytes():
    try:
        return int(pltpu.get_tpu_info().vmem_capacity_bytes)
    except Exception:
        return 64 << 20                             # conservative: v7x per-TC VMEM


def _choose_block_planes(num_planes, plane_elems, itemsize, vmem_cap):
    """Planes per grid step, sized from dtype and VMEM capacity."""
    # Target f32 working set per step: ~4 MiB on 128 MiB parts (v5e/v6e),
    # ~2 MiB on 64 MiB parts (v7x).  Keeps >=85% of HBM roofline and amortizes
    # the ~0.35 us per-grid-step overhead without risking VMEM pressure.
    target_bytes = (4 << 20) if vmem_cap >= (96 << 20) else (2 << 20)
    # Full per-plane, per-step footprint: double-buffered input + output
    # blocks plus ~4 live f32 value temporaries (x, v, rolled tap, h).
    per_plane = plane_elems * (4 * itemsize + 4 * 4)

    tb = max(1, target_bytes // max(plane_elems * 4, 1))
    tb = min(tb, max(1, int(0.45 * vmem_cap) // max(per_plane, 1)))
    if tb >= num_planes:
        return num_planes                           # full dim is always a legal block
    if num_planes >= 16:
        tb = min(tb, num_planes // 2)               # keep >=2 steps for megacore / v7x
    tb = (tb // 8) * 8                              # strict sub-block: multiple of 8
    if tb == 0:
        # TODO(synk): spatial tiling along H (1-row halo) for very large planes.
        tb = min(8, num_planes)
    return tb


def gaussian_blur_3x3(image, *, block_planes=None):
    """Depthwise 3x3 Gaussian blur (zero padding) on an NCHW image."""
    N, C, H, W = image.shape
    P, L = N * C, H * W
    dtype = image.dtype
    itemsize = jnp.dtype(dtype).itemsize

    # Lane-dense view: planes on the sublane axis, H*W on the lane axis.
    # Row-major collapse of contiguous dims -> no data movement.
    x = image.reshape(P, L)

    # Border masks (tiny; constant block index -> fetched into VMEM once).
    idx = jnp.arange(L, dtype=jnp.int32)
    col = idx % W
    row = idx // W
    mask_top = (row != 0).astype(jnp.float32).reshape(1, L)
    mask_bot = (row != H - 1).astype(jnp.float32).reshape(1, L)
    mask_l = (col != 0).astype(jnp.float32).reshape(1, L)
    mask_r = (col != W - 1).astype(jnp.float32).reshape(1, L)

    vmem_cap = _vmem_capacity_bytes()
    tb = block_planes if block_planes is not None else _choose_block_planes(
        P, L, itemsize, vmem_cap)
    grid = (pl.cdiv(P, tb),)

    # Scoped-VMEM limit: only raise it when the footprint needs it, and keep
    # headroom below physical capacity for Mosaic-internal scratch.
    per_plane = L * (4 * itemsize + 4 * 4)
    est_vmem = tb * per_plane + 8 * L * 4 + (2 << 20)
    vmem_limit = None
    if est_vmem > (32 << 20):
        vmem_limit = min(est_vmem, int(0.85 * vmem_cap))

    kernel = functools.partial(_blur3x3_kernel, W=W)
    mask_spec = pl.BlockSpec((1, L), lambda i: (0, 0))
    out = pl.pallas_call(
        kernel,
        out_shape=jax.ShapeDtypeStruct((P, L), dtype),
        grid_spec=pltpu.PrefetchScalarGridSpec(
            num_scalar_prefetch=0,
            grid=grid,
            in_specs=[
                pl.BlockSpec((tb, L), lambda i: (i, 0)),   # TB whole planes
                mask_spec,                                 # mask_top (constant block)
                mask_spec,                                 # mask_bot
                mask_spec,                                 # mask_l
                mask_spec,                                 # mask_r
            ],
            out_specs=pl.BlockSpec((tb, L), lambda i: (i, 0)),
        ),
        compiler_params=pltpu.CompilerParams(
            dimension_semantics=("parallel",),
            vmem_limit_bytes=vmem_limit,
        ),
    )(x, mask_top, mask_bot, mask_l, mask_r)

    return out.reshape(N, C, H, W)


class NonAffineTransforms:
    """JAX/Pallas port of dataset.transforms.NonAffineTransforms."""

    def __init__(self, transform) -> None:
        self.transform = transform

    def __call__(self, data):
        data["image"] = self.transform(data["image"])
        return data

    def __repr__(self) -> str:
        try:
            return self.transform.__repr__()
        except Exception:
            return self.__class__.__name__


if __name__ == "__main__":
    key = jax.random.PRNGKey(0)
    N, C, H, W = 2, 4, 16, 16
    image = jax.random.uniform(key, (N, C, H, W), dtype=jnp.float32)
    data = {"image": image, "label": jnp.arange(N, dtype=jnp.int32)}

    module = NonAffineTransforms(gaussian_blur_3x3)
    out = module(data)
    jax.block_until_ready(out["image"])

    # Pure-JAX reference: 9-tap zero-padded 3x3 Gaussian blur.
    wk = jnp.array(_GAUSS_3x3, dtype=jnp.float32)
    xpad = jnp.pad(image, ((0, 0), (0, 0), (1, 1), (1, 1)))
    ref = jnp.zeros_like(image)
    for di in range(3):
        for dj in range(3):
            ref = ref + wk[di, dj] * xpad[:, :, di:di + H, dj:dj + W]

    assert out["image"].shape == image.shape
    assert out["image"].dtype == image.dtype
    assert jnp.allclose(out["image"], ref, atol=1e-5), "mismatch vs reference"

    print("KERNEL_OK")
</pallas_src>

<mosaic_0001>
module attributes {stable_mosaic.version = 11 : i64} {
  func.func @_blur3x3_kernel(%arg0: i32, %arg1: memref<8x256xf32, #tpu.memory_space<vmem>>, %arg2: memref<1x256xf32, #tpu.memory_space<vmem>>, %arg3: memref<1x256xf32, #tpu.memory_space<vmem>>, %arg4: memref<1x256xf32, #tpu.memory_space<vmem>>, %arg5: memref<1x256xf32, #tpu.memory_space<vmem>>, %arg6: memref<8x256xf32, #tpu.memory_space<vmem>>) attributes {dimension_semantics = [#tpu.dimension_semantics<parallel>], iteration_bounds = array<i64: 1>, scalar_prefetch = 0 : i64, scratch_operands = 0 : i64, tpu.core_type = #tpu.core_type<tc>, window_params = [{transform_indices = @transform_0, window_bounds = array<i64: 8, 256>}, {pipeline_mode = #tpu.pipeline_mode<synchronous>, transform_indices = @transform_1, window_bounds = array<i64: 1, 256>}, {pipeline_mode = #tpu.pipeline_mode<synchronous>, transform_indices = @transform_2, window_bounds = array<i64: 1, 256>}, {pipeline_mode = #tpu.pipeline_mode<synchronous>, transform_indices = @transform_3, window_bounds = array<i64: 1, 256>}, {pipeline_mode = #tpu.pipeline_mode<synchronous>, transform_indices = @transform_4, window_bounds = array<i64: 1, 256>}, {transform_indices = @transform_5, window_bounds = array<i64: 8, 256>}]} {
    %c0 = arith.constant 0 : index
    %c0_0 = arith.constant 0 : index
    %0 = vector.load %arg1[%c0, %c0_0] : memref<8x256xf32, #tpu.memory_space<vmem>>, vector<8x256xf32>
    %1 = arith.addf %0, %0 : vector<8x256xf32>
    %c16_i32 = arith.constant 16 : i32
    %2 = tpu.dynamic_rotate %0 by %c16_i32 dim 1 : vector<8x256xf32>, i32 -> vector<8x256xf32>
    %c0_1 = arith.constant 0 : index
    %c0_2 = arith.constant 0 : index
    %3 = vector.load %arg2[%c0_1, %c0_2] : memref<1x256xf32, #tpu.memory_space<vmem>>, vector<1x256xf32>
    %4 = vector.broadcast %3 : vector<1x256xf32> to vector<8x256xf32>
    %5 = arith.mulf %2, %4 : vector<8x256xf32>
    %6 = arith.addf %1, %5 : vector<8x256xf32>
    %c240_i32 = arith.constant 240 : i32
    %7 = tpu.dynamic_rotate %0 by %c240_i32 dim 1 : vector<8x256xf32>, i32 -> vector<8x256xf32>
    %c0_3 = arith.constant 0 : index
    %c0_4 = arith.constant 0 : index
    %8 = vector.load %arg3[%c0_3, %c0_4] : memref<1x256xf32, #tpu.memory_space<vmem>>, vector<1x256xf32>
    %9 = vector.broadcast %8 : vector<1x256xf32> to vector<8x256xf32>
    %10 = arith.mulf %7, %9 : vector<8x256xf32>
    %11 = arith.addf %6, %10 : vector<8x256xf32>
    %12 = arith.addf %11, %11 : vector<8x256xf32>
    %c1_i32 = arith.constant 1 : i32
    %13 = tpu.dynamic_rotate %11 by %c1_i32 dim 1 : vector<8x256xf32>, i32 -> vector<8x256xf32>
    %c0_5 = arith.constant 0 : index
    %c0_6 = arith.constant 0 : index
    %14 = vector.load %arg4[%c0_5, %c0_6] : memref<1x256xf32, #tpu.memory_space<vmem>>, vector<1x256xf32>
    %15 = vector.broadcast %14 : vector<1x256xf32> to vector<8x256xf32>
    %16 = arith.mulf %13, %15 : vector<8x256xf32>
    %17 = arith.addf %12, %16 : vector<8x256xf32>
    %c255_i32 = arith.constant 255 : i32
    %18 = tpu.dynamic_rotate %11 by %c255_i32 dim 1 : vector<8x256xf32>, i32 -> vector<8x256xf32>
    %c0_7 = arith.constant 0 : index
    %c0_8 = arith.constant 0 : index
    %19 = vector.load %arg5[%c0_7, %c0_8] : memref<1x256xf32, #tpu.memory_space<vmem>>, vector<1x256xf32>
    %20 = vector.broadcast %19 : vector<1x256xf32> to vector<8x256xf32>
    %21 = arith.mulf %18, %20 : vector<8x256xf32>
    %22 = arith.addf %17, %21 : vector<8x256xf32>
    %cst = arith.constant 6.250000e-02 : f32
    %23 = vector.broadcast %cst : f32 to vector<8x256xf32>
    %24 = arith.mulf %22, %23 : vector<8x256xf32>
    %c0_9 = arith.constant 0 : index
    %c0_10 = arith.constant 0 : index
    %25 = vector.load %arg6[%c0_9, %c0_10] : memref<8x256xf32, #tpu.memory_space<vmem>>, vector<8x256xf32>
    tpu.vector_store %arg6[%c0_9, %c0_10], %24 {strides = array<i32>} : memref<8x256xf32, #tpu.memory_space<vmem>>, vector<8x256xf32>,
    return
  }
  func.func @transform_0(%arg0: i32) -> (i32, i32) {
    %c0_i32 = arith.constant 0 : i32
    %c0_i32_0 = arith.constant 0 : i32
    return %arg0, %c0_i32 : i32, i32
  }
  func.func @transform_1(%arg0: i32) -> (i32, i32) {
    %c0_i32 = arith.constant 0 : i32
    %c0_i32_0 = arith.constant 0 : i32
    %c0_i32_1 = arith.constant 0 : i32
    return %c0_i32, %c0_i32_0 : i32, i32
  }
  func.func @transform_2(%arg0: i32) -> (i32, i32) {
    %c0_i32 = arith.constant 0 : i32
    %c0_i32_0 = arith.constant 0 : i32
    %c0_i32_1 = arith.constant 0 : i32
    return %c0_i32, %c0_i32_0 : i32, i32
  }
  func.func @transform_3(%arg0: i32) -> (i32, i32) {
    %c0_i32 = arith.constant 0 : i32
    %c0_i32_0 = arith.constant 0 : i32
    %c0_i32_1 = arith.constant 0 : i32
    return %c0_i32, %c0_i32_0 : i32, i32
  }
  func.func @transform_4(%arg0: i32) -> (i32, i32) {
    %c0_i32 = arith.constant 0 : i32
    %c0_i32_0 = arith.constant 0 : i32
    %c0_i32_1 = arith.constant 0 : i32
    return %c0_i32, %c0_i32_0 : i32, i32
  }
  func.func @transform_5(%arg0: i32) -> (i32, i32) {
    %c0_i32 = arith.constant 0 : i32
    %c0_i32_0 = arith.constant 0 : i32
    return %arg0, %c0_i32 : i32, i32
  }
}

</mosaic_0001>

<llo_original>
// kernel: tpu_custom_call.1
$region0: #{tpu_custom_call.1}
  #allocation0 [shape = 'u32[]', space=smem, size = 0x4, offset = 0x4, fixed_abs, tag = 'smem constant byte address 0x4 - core index']
  #allocation1 [shape = 'u32[144,128]{1,0:T(1,128)}', space=vmem, size = 0x12000, scoped, tag = 'internal scratch']
  %s0 = inlined_call_operand.hbm [shape: f32[8,256], index: 0, kind: input, shape index: {}]
  %s1 = inlined_call_operand.vmem [shape: f32[1,256], index: 1, kind: input, shape index: {}]
  %s2 = inlined_call_operand.vmem [shape: f32[1,256], index: 2, kind: input, shape index: {}]
  %s3 = inlined_call_operand.vmem [shape: f32[1,256], index: 3, kind: input, shape index: {}]
  %s4 = inlined_call_operand.vmem [shape: f32[1,256], index: 4, kind: input, shape index: {}]
  %s5 = inlined_call_operand.hbm [shape: f32[8,256], index: 5, kind: output, shape index: {}]
  %s6 = sld [smem:[#allocation0]]
  $region34: #{tpu_custom_call.1} parent=0
    _
  %s8 = ssub.s32 1, %s6
  %s9 = scalar_select 0, %s8, %s6
  $region1: #{tpu_custom_call.1} parent=0
    #allocation2 [shape = 'u8[8192]{0}', space=vmem, size = 0x2000, scoped, tag = 'input window, operand 0, single buffered']
    #allocation3 [shape = 's32[1]{0}', space=sflag, size = 0x4, scoped, tag = 'scoped memory for tpu_custom_call.1']
    #allocation4 [shape = 's32[1]{0}', space=sflag, size = 0x4, scoped, tag = 'scoped memory for tpu_custom_call.1']
    #allocation5 [shape = 'u8[8192]{0}', space=vmem, size = 0x2000, scoped, tag = 'output window, operand 0, single buffered']
    %10 = vsyncpa [#allocation3], 0
    %11 = vsyncpa [#allocation4], 0
    // Predicated region
    $region2: #{tpu_custom_call.1} parent=1 // pred_check
      _
    $region3: #{tpu_custom_call.1} parent=1 // pred_check_branch
      %13 = sbr.rel (0) target = $region5
    $region4: #{tpu_custom_call.1} parent=1 // pred_region
      %s15 = ssub.s32 256, 256
      %16 = vsyncadd [#allocation3], %s15
      %s18 = sshll.u32 [#allocation2], 4
      %s19 = int_to_ptr.vmem [resolvable:$true] %s18
      %21 = dma.hbm_to_vmem [thread:$0]  %s0, 256, %s19, [#allocation3]
    $region5: #{tpu_custom_call.1} parent=1 // pred_fallthru
      _
    // Predicated region
    $region6: #{tpu_custom_call.1} parent=1 // pred_check
      _
    $region7: #{tpu_custom_call.1} parent=1 // pred_check_branch
      %23 = sbr.rel (0) target = $region9
    $region8: #{tpu_custom_call.1} parent=1 // pred_region
      _
    $region9: #{tpu_custom_call.1} parent=1 // pred_fallthru
      _
    // Predicated region
    $region10: #{tpu_custom_call.1} parent=1 // pred_check
      _
    $region11: #{tpu_custom_call.1} parent=1 // pred_check_branch
      %25 = sbr.rel (0) target = $region13
    $region12: #{tpu_custom_call.1} parent=1 // pred_region
      _
    $region13: #{tpu_custom_call.1} parent=1 // pred_fallthru
      _
    // Predicated region
    $region14: #{tpu_custom_call.1} parent=1 // pred_check
      _
    $region15: #{tpu_custom_call.1} parent=1 // pred_check_branch
      %27 = sbr.rel (0) target = $region17
    $region16: #{tpu_custom_call.1} parent=1 // pred_region
      _
    $region17: #{tpu_custom_call.1} parent=1 // pred_fallthru
      _
    // Predicated region
    $region18: #{tpu_custom_call.1} parent=1 // pred_check
      _
    $region19: #{tpu_custom_call.1} parent=1 // pred_check_branch
      %29 = sbr.rel (0) target = $region21
    $region20: #{tpu_custom_call.1} parent=1 // pred_region
      _
    $region21: #{tpu_custom_call.1} parent=1 // pred_fallthru
      _
    // Predicated region
    $region22: #{tpu_custom_call.1} parent=1 // pred_check
      _
    $region23: #{tpu_custom_call.1} parent=1 // pred_check_branch
      %31 = sbr.rel (0) target = $region25
    $region24: #{tpu_custom_call.1} parent=1 // pred_region
      %32 = dma.done [#allocation3], 256
    $region25: #{tpu_custom_call.1} parent=1 // pred_fallthru
      _
    %v33 = vld [vmem:[#allocation2] sm:$0xff]
    %v34 = vld [vmem:[#allocation2 + $0x8] sm:$0xff]
    %v35 = vadd.f32 %v33, %v33
    %v36 = vadd.f32 %v34, %v34
    %37 = vrot.lane.b32.xlu0 %v33, 16
    %v38 = vpop.permute.xlu0 %37
    %39 = vrot.lane.b32.xlu0 %v34, 16
    %v40 = vpop.permute.xlu0 %39
    %v41 = vlaneseq
    %v42 = vand.u32 %v41, 127
    %vm43 = vcmp.lt.s32.totalorder %v42, 16
    %v44 = vsel %vm43, %v38, %v40
    %v45 = vsel %vm43, %v40, %v38
    %v46 = vld [vmem:[%s1] sm:$0x3]
    %v48 = vlaneseq
    %v49 = vshrl.u32 %v48, 7
    %v50 = vsub.s32 0, %v49
    %v51 = vrot.slane %v46, %v50
    %v52 = vlaneseq
    %v53 = vshrl.u32 %v52, 7
    %v54 = vsub.s32 1, %v53
    %v55 = vrot.slane %v46, %v54
    %v58 = vmul.f32 %v45, %v51
    %v59 = vmul.f32 %v44, %v55
    %v60 = vadd.f32 %v35, %v58
    %v61 = vadd.f32 %v36, %v59
    %62 = vrot.lane.b32.xlu0 %v33, 112
    %v63 = vpop.permute.xlu0 %62
    %64 = vrot.lane.b32.xlu0 %v34, 112
    %v65 = vpop.permute.xlu0 %64
    %vm66 = vcmp.lt.s32.totalorder %v42, 112
    %v67 = vsel %vm66, %v63, %v65
    %v68 = vsel %vm66, %v65, %v63
    %v69 = vld [vmem:[%s2] sm:$0x3]
    %v71 = vlaneseq
    %v72 = vshrl.u32 %v71, 7
    %v73 = vsub.s32 0, %v72
    %v74 = vrot.slane %v69, %v73
    %v75 = vlaneseq
    %v76 = vshrl.u32 %v75, 7
    %v77 = vsub.s32 1, %v76
    %v78 = vrot.slane %v69, %v77
    %v81 = vmul.f32 %v67, %v74
    %v82 = vmul.f32 %v68, %v78
    %v83 = vadd.f32 %v60, %v81
    %v84 = vadd.f32 %v61, %v82
    %v85 = vadd.f32 %v83, %v83
    %v86 = vadd.f32 %v84, %v84
    %87 = vrot.lane.b32.xlu0 %v83, 1
    %v88 = vpop.permute.xlu0 %87
    %89 = vrot.lane.b32.xlu0 %v84, 1
    %v90 = vpop.permute.xlu0 %89
    %vm91 = vcmp.lt.s32.totalorder %v42, 1
    %v92 = vsel %vm91, %v88, %v90
    %v93 = vsel %vm91, %v90, %v88
    %v94 = vld [vmem:[%s3] sm:$0x3]
    %v96 = vlaneseq
    %v97 = vshrl.u32 %v96, 7
    %v98 = vsub.s32 0, %v97
    %v99 = vrot.slane %v94, %v98
    %v100 = vlaneseq
    %v101 = vshrl.u32 %v100, 7
    %v102 = vsub.s32 1, %v101
    %v103 = vrot.slane %v94, %v102
    %v106 = vmul.f32 %v93, %v99
    %v107 = vmul.f32 %v92, %v103
    %v108 = vadd.f32 %v85, %v106
    %v109 = vadd.f32 %v86, %v107
    %110 = vrot.lane.b32.xlu0 %v83, 127
    %v111 = vpop.permute.xlu0 %110
    %112 = vrot.lane.b32.xlu0 %v84, 127
    %v113 = vpop.permute.xlu0 %112
    %vm114 = vcmp.lt.s32.totalorder %v42, 127
    %v115 = vsel %vm114, %v111, %v113
    %v116 = vsel %vm114, %v113, %v111
    %v117 = vld [vmem:[%s4] sm:$0x3]
    %v119 = vlaneseq
    %v120 = vshrl.u32 %v119, 7
    %v121 = vsub.s32 0, %v120
    %v122 = vrot.slane %v117, %v121
    %v123 = vlaneseq
    %v124 = vshrl.u32 %v123, 7
    %v125 = vsub.s32 1, %v124
    %v126 = vrot.slane %v117, %v125
    %v129 = vmul.f32 %v115, %v122
    %v130 = vmul.f32 %v116, %v126
    %v131 = vadd.f32 %v108, %v129
    %v132 = vadd.f32 %v109, %v130
    %v133 = vmul.f32 %v131, 0.0625
    %v134 = vmul.f32 %v132, 0.0625
    %135 = vst [vmem:[#allocation5] sm:$0xff] %v133
    %136 = vst [vmem:[#allocation5 + $0x8] sm:$0xff] %v134
    // Predicated region
    $region26: #{tpu_custom_call.1} parent=1 // pred_check
      _
    $region27: #{tpu_custom_call.1} parent=1 // pred_check_branch
      %138 = sbr.rel (0) target = $region29
    $region28: #{tpu_custom_call.1} parent=1 // pred_region
      %s140 = ssub.s32 256, 256
      %141 = vsyncadd [#allocation4], %s140
      %s143 = sshll.u32 [#allocation5], 4
      %s144 = int_to_ptr.vmem [resolvable:$true] %s143
      %146 = dma.vmem_to_hbm [thread:$0]  %s144, 256, %s5, [#allocation4]
    $region29: #{tpu_custom_call.1} parent=1 // pred_fallthru
      _
    // Predicated region
    $region30: #{tpu_custom_call.1} parent=1 // pred_check
      _
    $region31: #{tpu_custom_call.1} parent=1 // pred_check_branch
      %148 = sbr.rel (0) target = $region33
    $region32: #{tpu_custom_call.1} parent=1 // pred_region
      %149 = dma.done [#allocation4], 256
    $region33: #{tpu_custom_call.1} parent=1 // pred_fallthru
      _
    %150 = vsyncpa [#allocation3], 1
    %151 = vsyncpa [#allocation4], 1

</llo_original>
